<compile_context>
chip_gen: v5e
topology: v5e:2x2
jax: 0.10.0
libtpu: 0.0.40
codegen_flags: <defaults>
</compile_context>

<pallas_src>
import functools

import jax
import jax.numpy as jnp
from jax.experimental import pallas as pl
from jax.experimental.pallas import tpu as pltpu

_HAS_BUFFERED = hasattr(pl, "Buffered")   # explicit capability check (no broad except)


def _round_up(n: int, m: int) -> int:
    return ((n + m - 1) // m) * m


def _choose_tm(m: int, tm_max: int = 512) -> int:
    """Token tile: multiple of 16 (bf16 sublane packing), as large as possible,
    but prefer >=2 grid steps so v7x's 2 TensorCores both get work."""
    tm = min(tm_max, _round_up(m, 16))
    if m <= tm and m >= 32:            # only one step would fit -> split in two
        tm = max(16, _round_up((m + 1) // 2, 16))
    return tm


def _const_spec(shape):
    """Constant-index block (weights / biases / LN params): stays resident in
    VMEM for the whole token loop; single-buffer so no VMEM is wasted on a
    second copy that is never refilled."""
    idx = lambda i: (0,) * len(shape)
    if _HAS_BUFFERED:
        return pl.BlockSpec(shape, idx, pipeline_mode=pl.Buffered(1))
    return pl.BlockSpec(shape, idx)


# ---------------------------------------------------------------------------
# Fused kernel: L x (X@W1+b1 -> ReLU -> @W2+b2) followed by LayerNormalization.
# refs = [x, (w1,b1,w2,b2)*L, alpha, bias, out, h_scratch]
# ---------------------------------------------------------------------------
def _encoder_kernel(*refs, n_layers, eps):
    x_ref = refs[0]
    layer_refs = refs[1:1 + 4 * n_layers]
    alpha_ref = refs[1 + 4 * n_layers]
    bias_ref = refs[2 + 4 * n_layers]
    o_ref = refs[3 + 4 * n_layers]
    h_ref = refs[4 + 4 * n_layers]          # (tm, d_ff) bf16 VMEM scratch

    x = x_ref[...].astype(jnp.float32)       # (tm, D)
    for l in range(n_layers):                # static unroll over layers
        w1_ref, b1_ref, w2_ref, b2_ref = layer_refs[4 * l: 4 * l + 4]
        # MXU matmul in bf16, f32 accumulation.
        h = jnp.dot(x.astype(jnp.bfloat16), w1_ref[...],
                    preferred_element_type=jnp.float32)
        h_ref[...] = jnp.maximum(h + b1_ref[...], 0.0).astype(h_ref.dtype)
        # dropout == identity (eval / inference mode)
        # TODO(synk): training-mode dropout would use pltpu.prng_seed +
        #             pltpu.stateful_bernoulli with 1/(1-p) scaling.
        x = jnp.dot(h_ref[...], w2_ref[...],
                    preferred_element_type=jnp.float32) + b2_ref[...]

    # LayerNormalization (matches torch: unbiased std, eps added to std).
    d = x.shape[-1]
    mean = jnp.mean(x, axis=-1, keepdims=True)
    centered = x - mean
    var = jnp.sum(centered * centered, axis=-1, keepdims=True) / (d - 1)
    inv = pl.reciprocal(jnp.sqrt(var) + eps, approx=True)    # EUP slot
    scale = alpha_ref[...].astype(jnp.float32) * inv          # (tm, D)
    o_ref[...] = (centered * scale
                  + bias_ref[...].astype(jnp.float32)).astype(o_ref.dtype)


def encoder_forward(x, layer_params, alpha, bias, *, eps=1e-6, tm_max=512):
    """x: [batch, seq, D] -> [batch, seq, D].  One fused pallas_call."""
    B, S, D = x.shape
    M = B * S
    n_layers = len(layer_params)
    d_ff = layer_params[0][0].shape[1]

    tm = _choose_tm(M, tm_max)
    grid = (pl.cdiv(M, tm),)                 # ragged edge block OK (row-wise math)

    x2d = x.reshape(M, D)

    in_specs = [pl.BlockSpec((tm, D), lambda i: (i, 0))]
    flat_params = []
    for (w1, b1, w2, b2) in layer_params:
        in_specs += [_const_spec((D, d_ff)), _const_spec((1, d_ff)),
                     _const_spec((d_ff, D)), _const_spec((1, D))]
        flat_params += [w1, b1.reshape(1, d_ff), w2, b2.reshape(1, D)]
    in_specs += [_const_spec((1, D)), _const_spec((1, D))]
    flat_params += [alpha.reshape(1, D), bias.reshape(1, D)]

    # VMEM budget: double-buffered x/out tiles + single-buffered params + scratch.
    elt = x.dtype.itemsize
    weight_bytes = sum(int(p.size * p.dtype.itemsize) for p in flat_params)
    tile_bytes = 2 * 2 * tm * D * elt
    scratch_bytes = tm * d_ff * 2            # bf16 hidden intermediate
    vmem_limit = min(48 << 20,               # headroom vs v7x's 64 MiB physical VMEM
                     weight_bytes + tile_bytes + scratch_bytes + (16 << 20))

    out2d = pl.pallas_call(
        functools.partial(_encoder_kernel, n_layers=n_layers, eps=eps),
        out_shape=jax.ShapeDtypeStruct((M, D), x.dtype),
        grid_spec=pltpu.PrefetchScalarGridSpec(
            num_scalar_prefetch=0,
            grid=grid,
            in_specs=in_specs,
            out_specs=pl.BlockSpec((tm, D), lambda i: (i, 0)),
            scratch_shapes=[pltpu.VMEM((tm, d_ff), jnp.bfloat16)],
        ),
        compiler_params=pltpu.CompilerParams(
            dimension_semantics=("parallel",),   # megacore sharding of token axis
            vmem_limit_bytes=int(vmem_limit),
        ),
        cost_estimate=pl.CostEstimate(
            flops=4 * M * D * d_ff * n_layers,   # two (M,D)x(D,d_ff) matmuls / layer
            transcendentals=M,                   # one reciprocal per row
            bytes_accessed=int(2 * M * D * elt + weight_bytes),
        ),
    )(x2d, *flat_params)

    return out2d.reshape(B, S, D)


# ---------------------------------------------------------------------------
# Encoder wrapper mirroring the PyTorch module.
# ---------------------------------------------------------------------------
class Encoder:
    def __init__(self, features, layer_params, eps=1e-6, tm_max=512):
        self.features = features
        # Store matmul weights in bf16 (MXU dtype / halves DMA), biases in f32.
        # NOTE: on v6e/v7x the 256-wide MXU is only half-filled by K=N=128;
        # multiples of 256 for d_model/d_ff would double per-push utilization.
        self.layer_params = [
            (w1.astype(jnp.bfloat16), b1.astype(jnp.float32),
             w2.astype(jnp.bfloat16), b2.astype(jnp.float32))
            for (w1, b1, w2, b2) in layer_params]
        self.eps = eps
        self.tm_max = tm_max
        # nn.Parameter defaults: alpha = ones, bias = zeros (learnable)
        self.alpha = jnp.ones((features,), jnp.float32)
        self.bias = jnp.zeros((features,), jnp.float32)

    def __call__(self, x, mask):
        # TODO(synk): the spec leaves the nn.ModuleList layer internals undefined
        # (real transformer sub-layers would consume `mask` in attention); the
        # fused kernel implements FFN demo layers + the exact LayerNormalization.
        del mask
        return encoder_forward(x, self.layer_params, self.alpha, self.bias,
                               eps=self.eps, tm_max=self.tm_max)


def init_ffn_params(key, d_model, d_ff, dtype=jnp.float32):
    """nn.Linear-style uniform(-1/sqrt(fan_in), 1/sqrt(fan_in)) init."""
    k1, k2, k3, k4 = jax.random.split(key, 4)
    bound1 = 1.0 / (d_model ** 0.5)
    bound2 = 1.0 / (d_ff ** 0.5)
    w1 = jax.random.uniform(k1, (d_model, d_ff), dtype, -bound1, bound1)
    b1 = jax.random.uniform(k2, (d_ff,), dtype, -bound1, bound1)
    w2 = jax.random.uniform(k3, (d_ff, d_model), dtype, -bound2, bound2)
    b2 = jax.random.uniform(k4, (d_model,), dtype, -bound2, bound2)
    return w1, b1, w2, b2


if __name__ == "__main__":
    key = jax.random.PRNGKey(0)
    batch, seq, d_model, d_ff, n_layers = 2, 8, 128, 256, 2

    kx, kp, ka, kb = jax.random.split(key, 4)
    x = jax.random.normal(kx, (batch, seq, d_model), jnp.float32)
    mask = jnp.ones((batch, 1, seq, seq), jnp.float32)   # unused by demo layers

    layer_params = [init_ffn_params(k, d_model, d_ff)
                    for k in jax.random.split(kp, n_layers)]

    enc = Encoder(d_model, layer_params, eps=1e-6)
    # non-trivial layernorm parameters to exercise the affine path
    enc.alpha = 1.0 + 0.1 * jax.random.normal(ka, (d_model,), jnp.float32)
    enc.bias = 0.1 * jax.random.normal(kb, (d_model,), jnp.float32)

    out = jax.block_until_ready(enc(x, mask))

    # pure-JAX reference mirroring the kernel's bf16-weight / f32-accumulate math
    ref = x
    for (w1, b1, w2, b2) in enc.layer_params:
        h = jnp.maximum(jnp.dot(ref.astype(jnp.bfloat16), w1,
                                preferred_element_type=jnp.float32) + b1, 0.0)
        ref = jnp.dot(h.astype(jnp.bfloat16), w2,
                      preferred_element_type=jnp.float32) + b2
    mean = ref.mean(axis=-1, keepdims=True)
    std = jnp.sqrt(jnp.sum((ref - mean) ** 2, axis=-1, keepdims=True)
                   / (d_model - 1))                      # unbiased, like torch.std
    ref = enc.alpha * (ref - mean) / (std + enc.eps) + enc.bias

    assert out.shape == (batch, seq, d_model)
    assert jnp.allclose(out, ref, atol=1e-2, rtol=1e-2), "mismatch vs reference"

    print("KERNEL_OK")
</pallas_src>

<mosaic_0001>
module attributes {stable_mosaic.version = 11 : i64} {
  func.func @_encoder_kernel(%arg0: i32, %arg1: memref<16x128xf32, #tpu.memory_space<vmem>>, %arg2: memref<128x256xbf16, #tpu.memory_space<vmem>>, %arg3: memref<1x256xf32, #tpu.memory_space<vmem>>, %arg4: memref<256x128xbf16, #tpu.memory_space<vmem>>, %arg5: memref<1x128xf32, #tpu.memory_space<vmem>>, %arg6: memref<128x256xbf16, #tpu.memory_space<vmem>>, %arg7: memref<1x256xf32, #tpu.memory_space<vmem>>, %arg8: memref<256x128xbf16, #tpu.memory_space<vmem>>, %arg9: memref<1x128xf32, #tpu.memory_space<vmem>>, %arg10: memref<1x128xf32, #tpu.memory_space<vmem>>, %arg11: memref<1x128xf32, #tpu.memory_space<vmem>>, %arg12: memref<16x128xf32, #tpu.memory_space<vmem>>, %arg13: memref<16x256xbf16, #tpu.memory_space<vmem>>) attributes {dimension_semantics = [#tpu.dimension_semantics<parallel>], iteration_bounds = array<i64: 1>, scalar_prefetch = 0 : i64, scratch_operands = 1 : i64, tpu.core_type = #tpu.core_type<tc>, window_params = [{transform_indices = @transform_0, window_bounds = array<i64: 16, 128>}, {pipeline_mode = #tpu.pipeline_mode<synchronous>, transform_indices = @transform_1, window_bounds = array<i64: 128, 256>}, {pipeline_mode = #tpu.pipeline_mode<synchronous>, transform_indices = @transform_2, window_bounds = array<i64: 1, 256>}, {pipeline_mode = #tpu.pipeline_mode<synchronous>, transform_indices = @transform_3, window_bounds = array<i64: 256, 128>}, {pipeline_mode = #tpu.pipeline_mode<synchronous>, transform_indices = @transform_4, window_bounds = array<i64: 1, 128>}, {pipeline_mode = #tpu.pipeline_mode<synchronous>, transform_indices = @transform_5, window_bounds = array<i64: 128, 256>}, {pipeline_mode = #tpu.pipeline_mode<synchronous>, transform_indices = @transform_6, window_bounds = array<i64: 1, 256>}, {pipeline_mode = #tpu.pipeline_mode<synchronous>, transform_indices = @transform_7, window_bounds = array<i64: 256, 128>}, {pipeline_mode = #tpu.pipeline_mode<synchronous>, transform_indices = @transform_8, window_bounds = array<i64: 1, 128>}, {pipeline_mode = #tpu.pipeline_mode<synchronous>, transform_indices = @transform_9, window_bounds = array<i64: 1, 128>}, {pipeline_mode = #tpu.pipeline_mode<synchronous>, transform_indices = @transform_10, window_bounds = array<i64: 1, 128>}, {transform_indices = @transform_11, window_bounds = array<i64: 16, 128>}]} {
    %c0 = arith.constant 0 : index
    %c0_0 = arith.constant 0 : index
    %0 = vector.load %arg1[%c0, %c0_0] : memref<16x128xf32, #tpu.memory_space<vmem>>, vector<16x128xf32>
    %1 = arith.truncf %0 : vector<16x128xf32> to vector<16x128xbf16>
    %c0_1 = arith.constant 0 : index
    %c0_2 = arith.constant 0 : index
    %2 = vector.load %arg2[%c0_1, %c0_2] : memref<128x256xbf16, #tpu.memory_space<vmem>>, vector<128x256xbf16>
    %cst = arith.constant dense<0.000000e+00> : vector<16x256xf32>
    %3 = tpu.matmul %1, %2, %cst {dimension_numbers = #tpu.dot_dimension_numbers<[1], [0], [0], [1], [0, 0, 1, 1], [], []>} : vector<16x128xbf16>, vector<128x256xbf16>, vector<16x256xf32> -> vector<16x256xf32>
    %c0_3 = arith.constant 0 : index
    %c0_4 = arith.constant 0 : index
    %4 = vector.load %arg3[%c0_3, %c0_4] : memref<1x256xf32, #tpu.memory_space<vmem>>, vector<1x256xf32>
    %5 = vector.broadcast %4 : vector<1x256xf32> to vector<16x256xf32>
    %6 = arith.addf %3, %5 : vector<16x256xf32>
    %cst_5 = arith.constant 0.000000e+00 : f32
    %7 = vector.broadcast %cst_5 : f32 to vector<16x256xf32>
    %8 = arith.maximumf %6, %7 : vector<16x256xf32>
    %9 = arith.truncf %8 : vector<16x256xf32> to vector<16x256xbf16>
    %c0_6 = arith.constant 0 : index
    %c0_7 = arith.constant 0 : index
    %10 = vector.load %arg13[%c0_6, %c0_7] : memref<16x256xbf16, #tpu.memory_space<vmem>>, vector<16x256xbf16>
    tpu.vector_store %arg13[%c0_6, %c0_7], %9 {strides = array<i32>} : memref<16x256xbf16, #tpu.memory_space<vmem>>, vector<16x256xbf16>,
    %c0_8 = arith.constant 0 : index
    %c0_9 = arith.constant 0 : index
    %11 = vector.load %arg13[%c0_8, %c0_9] : memref<16x256xbf16, #tpu.memory_space<vmem>>, vector<16x256xbf16>
    %c0_10 = arith.constant 0 : index
    %c0_11 = arith.constant 0 : index
    %12 = vector.load %arg4[%c0_10, %c0_11] : memref<256x128xbf16, #tpu.memory_space<vmem>>, vector<256x128xbf16>
    %cst_12 = arith.constant dense<0.000000e+00> : vector<16x128xf32>
    %13 = tpu.matmul %11, %12, %cst_12 {dimension_numbers = #tpu.dot_dimension_numbers<[1], [0], [0], [1], [0, 0, 1, 1], [], []>} : vector<16x256xbf16>, vector<256x128xbf16>, vector<16x128xf32> -> vector<16x128xf32>
    %c0_13 = arith.constant 0 : index
    %c0_14 = arith.constant 0 : index
    %14 = vector.load %arg5[%c0_13, %c0_14] : memref<1x128xf32, #tpu.memory_space<vmem>>, vector<1x128xf32>
    %15 = vector.broadcast %14 : vector<1x128xf32> to vector<16x128xf32>
    %16 = arith.addf %13, %15 : vector<16x128xf32>
    %17 = arith.truncf %16 : vector<16x128xf32> to vector<16x128xbf16>
    %c0_15 = arith.constant 0 : index
    %c0_16 = arith.constant 0 : index
    %18 = vector.load %arg6[%c0_15, %c0_16] : memref<128x256xbf16, #tpu.memory_space<vmem>>, vector<128x256xbf16>
    %cst_17 = arith.constant dense<0.000000e+00> : vector<16x256xf32>
    %19 = tpu.matmul %17, %18, %cst_17 {dimension_numbers = #tpu.dot_dimension_numbers<[1], [0], [0], [1], [0, 0, 1, 1], [], []>} : vector<16x128xbf16>, vector<128x256xbf16>, vector<16x256xf32> -> vector<16x256xf32>
    %c0_18 = arith.constant 0 : index
    %c0_19 = arith.constant 0 : index
    %20 = vector.load %arg7[%c0_18, %c0_19] : memref<1x256xf32, #tpu.memory_space<vmem>>, vector<1x256xf32>
    %21 = vector.broadcast %20 : vector<1x256xf32> to vector<16x256xf32>
    %22 = arith.addf %19, %21 : vector<16x256xf32>
    %cst_20 = arith.constant 0.000000e+00 : f32
    %23 = vector.broadcast %cst_20 : f32 to vector<16x256xf32>
    %24 = arith.maximumf %22, %23 : vector<16x256xf32>
    %25 = arith.truncf %24 : vector<16x256xf32> to vector<16x256xbf16>
    %c0_21 = arith.constant 0 : index
    %c0_22 = arith.constant 0 : index
    %26 = vector.load %arg13[%c0_21, %c0_22] : memref<16x256xbf16, #tpu.memory_space<vmem>>, vector<16x256xbf16>
    tpu.vector_store %arg13[%c0_21, %c0_22], %25 {strides = array<i32>} : memref<16x256xbf16, #tpu.memory_space<vmem>>, vector<16x256xbf16>,
    %c0_23 = arith.constant 0 : index
    %c0_24 = arith.constant 0 : index
    %27 = vector.load %arg13[%c0_23, %c0_24] : memref<16x256xbf16, #tpu.memory_space<vmem>>, vector<16x256xbf16>
    %c0_25 = arith.constant 0 : index
    %c0_26 = arith.constant 0 : index
    %28 = vector.load %arg8[%c0_25, %c0_26] : memref<256x128xbf16, #tpu.memory_space<vmem>>, vector<256x128xbf16>
    %cst_27 = arith.constant dense<0.000000e+00> : vector<16x128xf32>
    %29 = tpu.matmul %27, %28, %cst_27 {dimension_numbers = #tpu.dot_dimension_numbers<[1], [0], [0], [1], [0, 0, 1, 1], [], []>} : vector<16x256xbf16>, vector<256x128xbf16>, vector<16x128xf32> -> vector<16x128xf32>
    %c0_28 = arith.constant 0 : index
    %c0_29 = arith.constant 0 : index
    %30 = vector.load %arg9[%c0_28, %c0_29] : memref<1x128xf32, #tpu.memory_space<vmem>>, vector<1x128xf32>
    %31 = vector.broadcast %30 : vector<1x128xf32> to vector<16x128xf32>
    %32 = arith.addf %29, %31 : vector<16x128xf32>
    %cst_30 = arith.constant dense<0.000000e+00> : vector<16xf32>
    %33 = vector.multi_reduction <add>, %32, %cst_30 [1] : vector<16x128xf32> to vector<16xf32>
    %34 = vector.shape_cast %33 : vector<16xf32> to vector<16x1xf32>
    %cst_31 = arith.constant 1.280000e+02 : f32
    %35 = vector.broadcast %cst_31 : f32 to vector<16x1xf32>
    %36 = arith.divf %34, %35 : vector<16x1xf32>
    %37 = vector.broadcast %36 : vector<16x1xf32> to vector<16x128xf32>
    %38 = arith.subf %32, %37 : vector<16x128xf32>
    %39 = arith.mulf %38, %38 : vector<16x128xf32>
    %cst_32 = arith.constant dense<0.000000e+00> : vector<16xf32>
    %40 = vector.multi_reduction <add>, %39, %cst_32 [1] : vector<16x128xf32> to vector<16xf32>
    %41 = vector.shape_cast %40 : vector<16xf32> to vector<16x1xf32>
    %cst_33 = arith.constant 1.270000e+02 : f32
    %42 = vector.broadcast %cst_33 : f32 to vector<16x1xf32>
    %43 = arith.divf %41, %42 : vector<16x1xf32>
    %44 = math.sqrt %43 : vector<16x1xf32>
    %cst_34 = arith.constant 9.99999997E-7 : f32
    %45 = vector.broadcast %cst_34 : f32 to vector<16x1xf32>
    %46 = arith.addf %44, %45 : vector<16x1xf32>
    %47 = tpu.reciprocal %46 {approx = true} : vector<16x1xf32> -> vector<16x1xf32>
    %c0_35 = arith.constant 0 : index
    %c0_36 = arith.constant 0 : index
    %48 = vector.load %arg10[%c0_35, %c0_36] : memref<1x128xf32, #tpu.memory_space<vmem>>, vector<1x128xf32>
    %49 = vector.broadcast %48 : vector<1x128xf32> to vector<16x128xf32>
    %50 = vector.broadcast %47 : vector<16x1xf32> to vector<16x128xf32>
    %51 = arith.mulf %49, %50 : vector<16x128xf32>
    %52 = arith.mulf %38, %51 : vector<16x128xf32>
    %c0_37 = arith.constant 0 : index
    %c0_38 = arith.constant 0 : index
    %53 = vector.load %arg11[%c0_37, %c0_38] : memref<1x128xf32, #tpu.memory_space<vmem>>, vector<1x128xf32>
    %54 = vector.broadcast %53 : vector<1x128xf32> to vector<16x128xf32>
    %55 = arith.addf %52, %54 : vector<16x128xf32>
    %c0_39 = arith.constant 0 : index
    %c0_40 = arith.constant 0 : index
    %56 = vector.load %arg12[%c0_39, %c0_40] : memref<16x128xf32, #tpu.memory_space<vmem>>, vector<16x128xf32>
    tpu.vector_store %arg12[%c0_39, %c0_40], %55 {strides = array<i32>} : memref<16x128xf32, #tpu.memory_space<vmem>>, vector<16x128xf32>,
    return
  }
  func.func @transform_0(%arg0: i32) -> (i32, i32) {
    %c0_i32 = arith.constant 0 : i32
    %c0_i32_0 = arith.constant 0 : i32
    return %arg0, %c0_i32 : i32, i32
  }
  func.func @transform_1(%arg0: i32) -> (i32, i32) {
    %c0_i32 = arith.constant 0 : i32
    %c0_i32_0 = arith.constant 0 : i32
    %c0_i32_1 = arith.constant 0 : i32
    return %c0_i32, %c0_i32_0 : i32, i32
  }
  func.func @transform_2(%arg0: i32) -> (i32, i32) {
    %c0_i32 = arith.constant 0 : i32
    %c0_i32_0 = arith.constant 0 : i32
    %c0_i32_1 = arith.constant 0 : i32
    return %c0_i32, %c0_i32_0 : i32, i32
  }
  func.func @transform_3(%arg0: i32) -> (i32, i32) {
    %c0_i32 = arith.constant 0 : i32
    %c0_i32_0 = arith.constant 0 : i32
    %c0_i32_1 = arith.constant 0 : i32
    return %c0_i32, %c0_i32_0 : i32, i32
  }
  func.func @transform_4(%arg0: i32) -> (i32, i32) {
    %c0_i32 = arith.constant 0 : i32
    %c0_i32_0 = arith.constant 0 : i32
    %c0_i32_1 = arith.constant 0 : i32
    return %c0_i32, %c0_i32_0 : i32, i32
  }
  func.func @transform_5(%arg0: i32) -> (i32, i32) {
    %c0_i32 = arith.constant 0 : i32
    %c0_i32_0 = arith.constant 0 : i32
    %c0_i32_1 = arith.constant 0 : i32
    return %c0_i32, %c0_i32_0 : i32, i32
  }
  func.func @transform_6(%arg0: i32) -> (i32, i32) {
    %c0_i32 = arith.constant 0 : i32
    %c0_i32_0 = arith.constant 0 : i32
    %c0_i32_1 = arith.constant 0 : i32
    return %c0_i32, %c0_i32_0 : i32, i32
  }
  func.func @transform_7(%arg0: i32) -> (i32, i32) {
    %c0_i32 = arith.constant 0 : i32
    %c0_i32_0 = arith.constant 0 : i32
    %c0_i32_1 = arith.constant 0 : i32
    return %c0_i32, %c0_i32_0 : i32, i32
  }
  func.func @transform_8(%arg0: i32) -> (i32, i32) {
    %c0_i32 = arith.constant 0 : i32
    %c0_i32_0 = arith.constant 0 : i32
    %c0_i32_1 = arith.constant 0 : i32
    return %c0_i32, %c0_i32_0 : i32, i32
  }
  func.func @transform_9(%arg0: i32) -> (i32, i32) {
    %c0_i32 = arith.constant 0 : i32
    %c0_i32_0 = arith.constant 0 : i32
    %c0_i32_1 = arith.constant 0 : i32
    return %c0_i32, %c0_i32_0 : i32, i32
  }
  func.func @transform_10(%arg0: i32) -> (i32, i32) {
    %c0_i32 = arith.constant 0 : i32
    %c0_i32_0 = arith.constant 0 : i32
    %c0_i32_1 = arith.constant 0 : i32
    return %c0_i32, %c0_i32_0 : i32, i32
  }
  func.func @transform_11(%arg0: i32) -> (i32, i32) {
    %c0_i32 = arith.constant 0 : i32
    %c0_i32_0 = arith.constant 0 : i32
    return %arg0, %c0_i32 : i32, i32
  }
}

</mosaic_0001>

<llo_original>
// kernel: tpu_custom_call.1
$region0: #{tpu_custom_call.1}
  #allocation0 [shape = 'u32[]', space=smem, size = 0x4, offset = 0x4, fixed_abs, tag = 'smem constant byte address 0x4 - core index']
  #allocation1 [shape = 'u32[72,128]{1,0:T(1,128)}', space=vmem, size = 0x9000, scoped, tag = 'internal scratch']
  #allocation2 [shape = 'bf16[16,256]{1,0:T(8,128)(2,1)}', space=vmem, size = 0x2000, scoped, tag = 'scratch operand']
  %s0 = inlined_call_operand.hbm [shape: f32[16,128], index: 0, kind: input, shape index: {}]
  %s1 = inlined_call_operand.hbm [shape: bf16[128,256], index: 1, kind: input, shape index: {}]
  %s2 = inlined_call_operand.hbm [shape: f32[1,256], index: 2, kind: input, shape index: {}]
  %s3 = inlined_call_operand.hbm [shape: bf16[256,128], index: 3, kind: input, shape index: {}]
  %s4 = inlined_call_operand.vmem [shape: f32[1,128], index: 4, kind: input, shape index: {}]
  %s5 = inlined_call_operand.hbm [shape: bf16[128,256], index: 5, kind: input, shape index: {}]
  %s6 = inlined_call_operand.vmem [shape: f32[1,256], index: 6, kind: input, shape index: {}]
  %s7 = inlined_call_operand.hbm [shape: bf16[256,128], index: 7, kind: input, shape index: {}]
  %s8 = inlined_call_operand.vmem [shape: f32[1,128], index: 8, kind: input, shape index: {}]
  %s9 = inlined_call_operand.vmem [shape: f32[1,128], index: 9, kind: input, shape index: {}]
  %s10 = inlined_call_operand.vmem [shape: f32[1,128], index: 10, kind: input, shape index: {}]
  %s11 = inlined_call_operand.hbm [shape: f32[16,128], index: 11, kind: output, shape index: {}]
  %s12 = sld [smem:[#allocation0]]
  $region78: #{tpu_custom_call.1} parent=0
    _
  %s14 = ssub.s32 1, %s12
  %s15 = scalar_select 0, %s14, %s12
  $region1: #{tpu_custom_call.1} parent=0
    #allocation3 [shape = 'u8[8192]{0}', space=vmem, size = 0x2000, scoped, tag = 'input window, operand 0, single buffered']
    #allocation4 [shape = 's32[1]{0}', space=sflag, size = 0x4, scoped, tag = 'scoped memory for tpu_custom_call.1']
    #allocation5 [shape = 's32[1]{0}', space=sflag, size = 0x4, scoped, tag = 'scoped memory for tpu_custom_call.1']
    #allocation6 [shape = 'u8[65536]{0}', space=vmem, size = 0x10000, scoped, tag = 'input window, operand 1, single buffered']
    #allocation7 [shape = 's32[1]{0}', space=sflag, size = 0x4, scoped, tag = 'scoped memory for tpu_custom_call.1']
    #allocation8 [shape = 'u8[1024]{0}', space=vmem, size = 0x400, scoped, tag = 'input window, operand 2, single buffered']
    #allocation9 [shape = 'u8[65536]{0}', space=vmem, size = 0x10000, scoped, tag = 'input window, operand 3, single buffered']
    #allocation10 [shape = 's32[1]{0}', space=sflag, size = 0x4, scoped, tag = 'scoped memory for tpu_custom_call.1']
    #allocation11 [shape = 'u8[65536]{0}', space=vmem, size = 0x10000, scoped, tag = 'input window, operand 5, single buffered']
    #allocation12 [shape = 'u8[65536]{0}', space=vmem, size = 0x10000, scoped, tag = 'input window, operand 7, single buffered']
    #allocation13 [shape = 's32[1]{0}', space=sflag, size = 0x4, scoped, tag = 'scoped memory for tpu_custom_call.1']
    #allocation14 [shape = 'u8[8192]{0}', space=vmem, size = 0x2000, scoped, tag = 'output window, operand 0, single buffered']
    %16 = vsyncpa [#allocation4], 0
    %17 = vsyncpa [#allocation7], 0
    %18 = vsyncpa [#allocation10], 0
    %19 = vsyncpa [#allocation13], 0
    %20 = vsyncpa [#allocation5], 0
    // Predicated region
    $region2: #{tpu_custom_call.1} parent=1 // pred_check
      _
    $region3: #{tpu_custom_call.1} parent=1 // pred_check_branch
      %22 = sbr.rel (0) target = $region5
    $region4: #{tpu_custom_call.1} parent=1 // pred_region
      %24 = vsyncadd [#allocation4], 0
      %s25 = sshll.u32 %s0, 4
      %s26 = int_to_ptr.hbm [resolvable:$true] %s25
      %s27 = sshll.u32 [#allocation3], 4
      %s28 = int_to_ptr.vmem [resolvable:$true] %s27
      %33 = dma.hbm_to_vmem [thread:$0]  %s26, 256, %s28, [#allocation4], 128, 128, 8
    $region5: #{tpu_custom_call.1} parent=1 // pred_fallthru
      _
    // Predicated region
    $region6: #{tpu_custom_call.1} parent=1 // pred_check
      _
    $region7: #{tpu_custom_call.1} parent=1 // pred_check_branch
      %35 = sbr.rel (0) target = $region9
    $region8: #{tpu_custom_call.1} parent=1 // pred_region
      %37 = vsyncadd [#allocation7], 0
      %s38 = sshll.u32 %s1, 4
      %s39 = int_to_ptr.hbm [resolvable:$true] %s38
      %s40 = sshll.u32 [#allocation6], 4
      %s41 = int_to_ptr.vmem [resolvable:$true] %s40
      %46 = dma.hbm_to_vmem [thread:$0]  %s39, 2048, %s41, [#allocation7], 128, 128, 8
    $region9: #{tpu_custom_call.1} parent=1 // pred_fallthru
      _
    // Predicated region
    $region10: #{tpu_custom_call.1} parent=1 // pred_check
      _
    $region11: #{tpu_custom_call.1} parent=1 // pred_check_branch
      %48 = sbr.rel (0) target = $region13
    $region12: #{tpu_custom_call.1} parent=1 // pred_region
      %50 = vsyncadd [#allocation7], 0
      %s52 = sshll.u32 %s2, 4
      %s53 = int_to_ptr.hbm [resolvable:$true] %s52
      %s54 = sshll.u32 [#allocation8], 4
      %s55 = int_to_ptr.vmem [resolvable:$true] %s54
      %57 = dma.hbm_to_vmem [thread:$0]  %s53, 32, %s55, [#allocation7]
    $region13: #{tpu_custom_call.1} parent=1 // pred_fallthru
      _
    // Predicated region
    $region14: #{tpu_custom_call.1} parent=1 // pred_check
      _
    $region15: #{tpu_custom_call.1} parent=1 // pred_check_branch
      %59 = sbr.rel (0) target = $region17
    $region16: #{tpu_custom_call.1} parent=1 // pred_region
      %61 = vsyncadd [#allocation10], 0
      %s62 = sshll.u32 %s3, 4
      %s63 = int_to_ptr.hbm [resolvable:$true] %s62
      %s64 = sshll.u32 [#allocation9], 4
      %s65 = int_to_ptr.vmem [resolvable:$true] %s64
      %70 = dma.hbm_to_vmem [thread:$0]  %s63, 2048, %s65, [#allocation10], 64, 64, 4
    $region17: #{tpu_custom_call.1} parent=1 // pred_fallthru
      _
    // Predicated region
    $region18: #{tpu_custom_call.1} parent=1 // pred_check
      _
    $region19: #{tpu_custom_call.1} parent=1 // pred_check_branch
      %72 = sbr.rel (0) target = $region21
    $region20: #{tpu_custom_call.1} parent=1 // pred_region
      _
    $region21: #{tpu_custom_call.1} parent=1 // pred_fallthru
      _
    // Predicated region
    $region22: #{tpu_custom_call.1} parent=1 // pred_check
      _
    $region23: #{tpu_custom_call.1} parent=1 // pred_check_branch
      %74 = sbr.rel (0) target = $region25
    $region24: #{tpu_custom_call.1} parent=1 // pred_region
      %76 = vsyncadd [#allocation10], 0
      %s77 = sshll.u32 %s5, 4
      %s78 = int_to_ptr.hbm [resolvable:$true] %s77
      %s79 = sshll.u32 [#allocation11], 4
      %s80 = int_to_ptr.vmem [resolvable:$true] %s79
      %85 = dma.hbm_to_vmem [thread:$0]  %s78, 2048, %s80, [#allocation10], 128, 128, 8
    $region25: #{tpu_custom_call.1} parent=1 // pred_fallthru
      _
    // Predicated region
    $region26: #{tpu_custom_call.1} parent=1 // pred_check
      _
    $region27: #{tpu_custom_call.1} parent=1 // pred_check_branch
      %87 = sbr.rel (0) target = $region29
    $region28: #{tpu_custom_call.1} parent=1 // pred_region
      _
    $region29: #{tpu_custom_call.1} parent=1 // pred_fallthru
      _
    // Predicated region
    $region30: #{tpu_custom_call.1} parent=1 // pred_check
      _
    $region31: #{tpu_custom_call.1} parent=1 // pred_check_branch
      %89 = sbr.rel (0) target = $region33
    $region32: #{tpu_custom_call.1} parent=1 // pred_region
      %91 = vsyncadd [#allocation13], 0
      %s92 = sshll.u32 %s7, 4
      %s93 = int_to_ptr.hbm [resolvable:$true] %s92
      %s94 = sshll.u32 [#allocation12], 4
      %s95 = int_to_ptr.vmem [resolvable:$true] %s94
      %100 = dma.hbm_to_vmem [thread:$0]  %s93, 2048, %s95, [#allocation13], 64, 64, 4
    $region33: #{tpu_custom_call.1} parent=1 // pred_fallthru
      _
    // Predicated region
    $region34: #{tpu_custom_call.1} parent=1 // pred_check
      _
    $region35: #{tpu_custom_call.1} parent=1 // pred_check_branch
      %102 = sbr.rel (0) target = $region37
    $region36: #{tpu_custom_call.1} parent=1 // pred_region
      _
    $region37: #{tpu_custom_call.1} parent=1 // pred_fallthru
      _
    // Predicated region
    $region38: #{tpu_custom_call.1} parent=1 // pred_check
      _
    $region39: #{tpu_custom_call.1} parent=1 // pred_check_branch
      %104 = sbr.rel (0) target = $region41
    $region40: #{tpu_custom_call.1} parent=1 // pred_region
      _
    $region41: #{tpu_custom_call.1} parent=1 // pred_fallthru
      _
    // Predicated region
    $region42: #{tpu_custom_call.1} parent=1 // pred_check
      _
    $region43: #{tpu_custom_call.1} parent=1 // pred_check_branch
      %106 = sbr.rel (0) target = $region45
    $region44: #{tpu_custom_call.1} parent=1 // pred_region
      _
    $region45: #{tpu_custom_call.1} parent=1 // pred_fallthru
      _
    // Predicated region
    $region46: #{tpu_custom_call.1} parent=1 // pred_check
      _
    $region47: #{tpu_custom_call.1} parent=1 // pred_check_branch
      %108 = sbr.rel (0) target = $region49
    $region48: #{tpu_custom_call.1} parent=1 // pred_region
      %110 = dma.done [#allocation4], 256
    $region49: #{tpu_custom_call.1} parent=1 // pred_fallthru
      _
    // Predicated region
    $region50: #{tpu_custom_call.1} parent=1 // pred_check
      _
    $region51: #{tpu_custom_call.1} parent=1 // pred_check_branch
      %112 = sbr.rel (0) target = $region53
    $region52: #{tpu_custom_call.1} parent=1 // pred_region
      %114 = dma.done [#allocation7], 2048
    $region53: #{tpu_custom_call.1} parent=1 // pred_fallthru
      _
    // Predicated region
    $region54: #{tpu_custom_call.1} parent=1 // pred_check
      _
    $region55: #{tpu_custom_call.1} parent=1 // pred_check_branch
      %116 = sbr.rel (0) target = $region57
    $region56: #{tpu_custom_call.1} parent=1 // pred_region
      %118 = dma.done [#allocation7], 32
    $region57: #{tpu_custom_call.1} parent=1 // pred_fallthru
      _
    // Predicated region
    $region58: #{tpu_custom_call.1} parent=1 // pred_check
      _
    $region59: #{tpu_custom_call.1} parent=1 // pred_check_branch
      %120 = sbr.rel (0) target = $region61
    $region60: #{tpu_custom_call.1} parent=1 // pred_region
      %122 = dma.done [#allocation10], 2048
    $region61: #{tpu_custom_call.1} parent=1 // pred_fallthru
      _
    // Predicated region
    $region62: #{tpu_custom_call.1} parent=1 // pred_check
      _
    $region63: #{tpu_custom_call.1} parent=1 // pred_check_branch
      %124 = sbr.rel (0) target = $region65
    $region64: #{tpu_custom_call.1} parent=1 // pred_region
      %126 = dma.done [#allocation10], 2048
    $region65: #{tpu_custom_call.1} parent=1 // pred_fallthru
      _
    // Predicated region
    $region66: #{tpu_custom_call.1} parent=1 // pred_check
      _
    $region67: #{tpu_custom_call.1} parent=1 // pred_check_branch
      %128 = sbr.rel (0) target = $region69
    $region68: #{tpu_custom_call.1} parent=1 // pred_region
      %130 = dma.done [#allocation13], 2048
    $region69: #{tpu_custom_call.1} parent=1 // pred_fallthru
      _
    %v131 = vld [vmem:[#allocation3] sm:$0xff]
    %v132 = vld [vmem:[#allocation3 + $0x8] sm:$0xff]
    %v133 = vpack.c.bf16 %v132, %v131
    %v134 = vld [vmem:[#allocation6] sm:$0xff]
    %v135 = vld [vmem:[#allocation6 + $0x8] sm:$0xff]
    %v136 = vld [vmem:[#allocation6 + $0x10] sm:$0xff]
    %v137 = vld [vmem:[#allocation6 + $0x18] sm:$0xff]
    %v138 = vld [vmem:[#allocation6 + $0x20] sm:$0xff]
    %v139 = vld [vmem:[#allocation6 + $0x28] sm:$0xff]
    %v140 = vld [vmem:[#allocation6 + $0x30] sm:$0xff]
    %v141 = vld [vmem:[#allocation6 + $0x38] sm:$0xff]
    %v142 = vld [vmem:[#allocation6 + $0x40] sm:$0xff]
    %v143 = vld [vmem:[#allocation6 + $0x48] sm:$0xff]
    %v144 = vld [vmem:[#allocation6 + $0x50] sm:$0xff]
    %v145 = vld [vmem:[#allocation6 + $0x58] sm:$0xff]
    %v146 = vld [vmem:[#allocation6 + $0x60] sm:$0xff]
    %v147 = vld [vmem:[#allocation6 + $0x68] sm:$0xff]
    %v148 = vld [vmem:[#allocation6 + $0x70] sm:$0xff]
    %v149 = vld [vmem:[#allocation6 + $0x78] sm:$0xff]
    %v150 = vld [vmem:[#allocation8] sm:$0x3]
    %v152 = vperm.slane %v150, 0
    %v153 = vperm.slane %v150, 1
    %v172 = vunpack.c.l.b16 %v134
    %v173 = vunpack.c.h.b16 %v134
    %v174 = vunpack.c.l.b16 %v135
    %v175 = vunpack.c.h.b16 %v135
    %v176 = vunpack.c.l.b16 %v136
    %v177 = vunpack.c.h.b16 %v136
    %v178 = vunpack.c.l.b16 %v137
    %v179 = vunpack.c.h.b16 %v137
    %v180 = vunpack.c.l.b16 %v138
    %v181 = vunpack.c.h.b16 %v138
    %v182 = vunpack.c.l.b16 %v139
    %v183 = vunpack.c.h.b16 %v139
    %v184 = vunpack.c.l.b16 %v140
    %v185 = vunpack.c.h.b16 %v140
    %v186 = vunpack.c.l.b16 %v141
    %v187 = vunpack.c.h.b16 %v141
    %v188 = vunpack.c.l.b16 %v142
    %v189 = vunpack.c.h.b16 %v142
    %v190 = vunpack.c.l.b16 %v143
    %v191 = vunpack.c.h.b16 %v143
    %v192 = vunpack.c.l.b16 %v144
    %v193 = vunpack.c.h.b16 %v144
    %v194 = vunpack.c.l.b16 %v145
    %v195 = vunpack.c.h.b16 %v145
    %v196 = vunpack.c.l.b16 %v146
    %v197 = vunpack.c.h.b16 %v146
    %v198 = vunpack.c.l.b16 %v147
    %v199 = vunpack.c.h.b16 %v147
    %v200 = vunpack.c.l.b16 %v148
    %v201 = vunpack.c.h.b16 %v148
    %v202 = vunpack.c.l.b16 %v149
    %v203 = vunpack.c.h.b16 %v149
    %v204 = vpack.c.b16 %v174, %v172
    %v205 = vpack.c.b16 %v175, %v173
    %v206 = vpack.c.b16 %v178, %v176
    %v207 = vpack.c.b16 %v179, %v177
    %v208 = vpack.c.b16 %v182, %v180
    %v209 = vpack.c.b16 %v183, %v181
    %v210 = vpack.c.b16 %v186, %v184
    %v211 = vpack.c.b16 %v187, %v185
    %v212 = vpack.c.b16 %v190, %v188
    %v213 = vpack.c.b16 %v191, %v189
    %v214 = vpack.c.b16 %v194, %v192
    %v215 = vpack.c.b16 %v195, %v193
    %v216 = vpack.c.b16 %v198, %v196
    %v217 = vpack.c.b16 %v199, %v197
    %v218 = vpack.c.b16 %v202, %v200
    %v219 = vpack.c.b16 %v203, %v201
    %236 = vmatpush.bf16.msra.mxu0 %v218
    %237 = vmatpush.bf16.msra.mxu0 %v216
    %238 = vmatpush.bf16.msra.mxu0 %v214
    %239 = vmatpush.bf16.msra.mxu0 %v212
    %240 = vmatpush.bf16.msra.mxu0 %v210
    %241 = vmatpush.bf16.msra.mxu0 %v208
    %242 = vmatpush.bf16.msra.mxu0 %v206
    %243 = vmatpush.bf16.msra.mxu0 %v204
    %244 = vmatmul.bf16.gmra.mxu0 %v133
    %v245 = vpop.f32.mrf.mxu0
    %v246 = vadd.f32 %v152, %v245
    %v247 = vpop.f32.mrf.mxu0
    %v248 = vadd.f32 %v152, %v247
    %249 = vdwg.mxu0
    %250 = vmatpush.bf16.msra.mxu0 %v219
    %251 = vmatpush.bf16.msra.mxu0 %v217
    %252 = vmatpush.bf16.msra.mxu0 %v215
    %253 = vmatpush.bf16.msra.mxu0 %v213
    %254 = vmatpush.bf16.msra.mxu0 %v211
    %255 = vmatpush.bf16.msra.mxu0 %v209
    %256 = vmatpush.bf16.msra.mxu0 %v207
    %257 = vmatpush.bf16.msra.mxu0 %v205
    %258 = vmatmul.bf16.gmra.mxu0 %v133
    %v259 = vpop.f32.mrf.mxu0
    %v260 = vadd.f32 %v153, %v259
    %v261 = vpop.f32.mrf.mxu0
    %v262 = vadd.f32 %v153, %v261
    %263 = vdwg.mxu0
    %v264 = vmax.f32 %v246, 0.0
    %v265 = vmax.f32 %v260, 0.0
    %v266 = vmax.f32 %v248, 0.0
    %v267 = vmax.f32 %v262, 0.0
    %v268 = vpack.c.bf16 %v265, %v264
    %v269 = vpack.c.bf16 %v267, %v266
    %270 = vst [vmem:[#allocation2] sm:$0xff] %v268
    %271 = vst [vmem:[#allocation2 + $0x8] sm:$0xff] %v269
    %v272 = vld [vmem:[#allocation2] sm:$0xff]
    %v273 = vld [vmem:[#allocation2 + $0x8] sm:$0xff]
    %v274 = vld [vmem:[#allocation9] sm:$0xf]
    %v275 = vld [vmem:[#allocation9 + $0x4] sm:$0xf]
    %v276 = vld [vmem:[#allocation9 + $0x8] sm:$0xf]
    %v277 = vld [vmem:[#allocation9 + $0xc] sm:$0xf]
    %v278 = vld [vmem:[#allocation9 + $0x10] sm:$0xf]
    %v279 = vld [vmem:[#allocation9 + $0x14] sm:$0xf]
    %v280 = vld [vmem:[#allocation9 + $0x18] sm:$0xf]
    %v281 = vld [vmem:[#allocation9 + $0x1c] sm:$0xf]
    %v282 = vld [vmem:[#allocation9 + $0x20] sm:$0xf]
    %v283 = vld [vmem:[#allocation9 + $0x24] sm:$0xf]
    %v284 = vld [vmem:[#allocation9 + $0x28] sm:$0xf]
    %v285 = vld [vmem:[#allocation9 + $0x2c] sm:$0xf]
    %v286 = vld [vmem:[#allocation9 + $0x30] sm:$0xf]
    %v287 = vld [vmem:[#allocation9 + $0x34] sm:$0xf]
    %v288 = vld [vmem:[#allocation9 + $0x38] sm:$0xf]
    %v289 = vld [vmem:[#allocation9 + $0x3c] sm:$0xf]
    %v290 = vld [vmem:[#allocation9 + $0x40] sm:$0xf]
    %v291 = vld [vmem:[#allocation9 + $0x44] sm:$0xf]
    %v292 = vld [vmem:[#allocation9 + $0x48] sm:$0xf]
    %v293 = vld [vmem:[#allocation9 + $0x4c] sm:$0xf]
    %v294 = vld [vmem:[#allocation9 + $0x50] sm:$0xf]
    %v295 = vld [vmem:[#allocation9 + $0x54] sm:$0xf]
    %v296 = vld [vmem:[#allocation9 + $0x58] sm:$0xf]
    %v297 = vld [vmem:[#allocation9 + $0x5c] sm:$0xf]
    %v298 = vld [vmem:[#allocation9 + $0x60] sm:$0xf]
    %v299 = vld [vmem:[#allocation9 + $0x64] sm:$0xf]
    %v300 = vld [vmem:[#allocation9 + $0x68] sm:$0xf]
    %v301 = vld [vmem:[#allocation9 + $0x6c] sm:$0xf]
    %v302 = vld [vmem:[#allocation9 + $0x70] sm:$0xf]
    %v303 = vld [vmem:[#allocation9 + $0x74] sm:$0xf]
    %v304 = vld [vmem:[#allocation9 + $0x78] sm:$0xf]
    %v305 = vld [vmem:[#allocation9 + $0x7c] sm:$0xf]
    %v306 = vld [vmem:[%s4] sm:$0x1]
    %v308 = vperm.slane %v306, 0
    %v312 = vunpack.c.l.b16 %v272
    %v313 = vunpack.c.h.b16 %v272
    %v314 = vunpack.c.l.b16 %v273
    %v315 = vunpack.c.h.b16 %v273
    %v316 = vpack.c.b16 %v314, %v312
    %v317 = vpack.c.b16 %v315, %v313
    %v352 = vunpack.c.l.b16 %v274
    %v353 = vunpack.c.l.b16 %v275
    %v354 = vunpack.c.l.b16 %v276
    %v355 = vunpack.c.l.b16 %v277
    %v356 = vunpack.c.l.b16 %v278
    %v357 = vunpack.c.l.b16 %v279
    %v358 = vunpack.c.l.b16 %v280
    %v359 = vunpack.c.l.b16 %v281
    %v360 = vunpack.c.l.b16 %v282
    %v361 = vunpack.c.l.b16 %v283
    %v362 = vunpack.c.l.b16 %v284
    %v363 = vunpack.c.l.b16 %v285
    %v364 = vunpack.c.l.b16 %v286
    %v365 = vunpack.c.l.b16 %v287
    %v366 = vunpack.c.l.b16 %v288
    %v367 = vunpack.c.l.b16 %v289
    %v368 = vunpack.c.l.b16 %v290
    %v369 = vunpack.c.l.b16 %v291
    %v370 = vunpack.c.l.b16 %v292
    %v371 = vunpack.c.l.b16 %v293
    %v372 = vunpack.c.l.b16 %v294
    %v373 = vunpack.c.l.b16 %v295
    %v374 = vunpack.c.l.b16 %v296
    %v375 = vunpack.c.l.b16 %v297
    %v376 = vunpack.c.l.b16 %v298
    %v377 = vunpack.c.l.b16 %v299
    %v378 = vunpack.c.l.b16 %v300
    %v379 = vunpack.c.l.b16 %v301
    %v380 = vunpack.c.l.b16 %v302
    %v381 = vunpack.c.l.b16 %v303
    %v382 = vunpack.c.l.b16 %v304
    %v383 = vunpack.c.l.b16 %v305
    %v384 = vpack.c.b16 %v353, %v352
    %v385 = vpack.c.b16 %v355, %v354
    %v386 = vpack.c.b16 %v357, %v356
    %v387 = vpack.c.b16 %v359, %v358
    %v388 = vpack.c.b16 %v361, %v360
    %v389 = vpack.c.b16 %v363, %v362
    %v390 = vpack.c.b16 %v365, %v364
    %v391 = vpack.c.b16 %v367, %v366
    %v392 = vpack.c.b16 %v369, %v368
    %v393 = vpack.c.b16 %v371, %v370
    %v394 = vpack.c.b16 %v373, %v372
    %v395 = vpack.c.b16 %v375, %v374
    %v396 = vpack.c.b16 %v377, %v376
    %v397 = vpack.c.b16 %v379, %v378
    %v398 = vpack.c.b16 %v381, %v380
    %v399 = vpack.c.b16 %v383, %v382
    %416 = vmatpush.bf16.msra.mxu0 %v391
    %417 = vmatpush.bf16.msra.mxu0 %v390
    %418 = vmatpush.bf16.msra.mxu0 %v389
    %419 = vmatpush.bf16.msra.mxu0 %v388
    %420 = vmatpush.bf16.msra.mxu0 %v387
    %421 = vmatpush.bf16.msra.mxu0 %v386
    %422 = vmatpush.bf16.msra.mxu0 %v385
    %423 = vmatpush.bf16.msra.mxu0 %v384
    %424 = vmatmul.bf16.gmra.mxu0 %v316
    %v425 = vpop.f32.mrf.mxu0
    %v426 = vadd.f32 %v308, %v425
    %v427 = vpop.f32.mrf.mxu0
    %v428 = vadd.f32 %v308, %v427
    %429 = vdwg.mxu0
    %430 = vmatpush.bf16.msra.mxu0 %v399
    %431 = vmatpush.bf16.msra.mxu0 %v398
    %432 = vmatpush.bf16.msra.mxu0 %v397
    %433 = vmatpush.bf16.msra.mxu0 %v396
    %434 = vmatpush.bf16.msra.mxu0 %v395
    %435 = vmatpush.bf16.msra.mxu0 %v394
    %436 = vmatpush.bf16.msra.mxu0 %v393
    %437 = vmatpush.bf16.msra.mxu0 %v392
    %438 = vmatmul.bf16.gmra.mxu0 %v317
    %v439 = vpop.f32.mrf.mxu0
    %v440 = vadd.f32 %v426, %v439
    %v441 = vpop.f32.mrf.mxu0
    %v442 = vadd.f32 %v428, %v441
    %443 = vdwg.mxu0
    %v444 = vpack.c.bf16 %v442, %v440
    %v445 = vld [vmem:[#allocation11] sm:$0xff]
    %v446 = vld [vmem:[#allocation11 + $0x8] sm:$0xff]
    %v447 = vld [vmem:[#allocation11 + $0x10] sm:$0xff]
    %v448 = vld [vmem:[#allocation11 + $0x18] sm:$0xff]
    %v449 = vld [vmem:[#allocation11 + $0x20] sm:$0xff]
    %v450 = vld [vmem:[#allocation11 + $0x28] sm:$0xff]
    %v451 = vld [vmem:[#allocation11 + $0x30] sm:$0xff]
    %v452 = vld [vmem:[#allocation11 + $0x38] sm:$0xff]
    %v453 = vld [vmem:[#allocation11 + $0x40] sm:$0xff]
    %v454 = vld [vmem:[#allocation11 + $0x48] sm:$0xff]
    %v455 = vld [vmem:[#allocation11 + $0x50] sm:$0xff]
    %v456 = vld [vmem:[#allocation11 + $0x58] sm:$0xff]
    %v457 = vld [vmem:[#allocation11 + $0x60] sm:$0xff]
    %v458 = vld [vmem:[#allocation11 + $0x68] sm:$0xff]
    %v459 = vld [vmem:[#allocation11 + $0x70] sm:$0xff]
    %v460 = vld [vmem:[#allocation11 + $0x78] sm:$0xff]
    %v461 = vld [vmem:[%s6] sm:$0x3]
    %v463 = vperm.slane %v461, 0
    %v464 = vperm.slane %v461, 1
    %v483 = vunpack.c.l.b16 %v445
    %v484 = vunpack.c.h.b16 %v445
    %v485 = vunpack.c.l.b16 %v446
    %v486 = vunpack.c.h.b16 %v446
    %v487 = vunpack.c.l.b16 %v447
    %v488 = vunpack.c.h.b16 %v447
    %v489 = vunpack.c.l.b16 %v448
    %v490 = vunpack.c.h.b16 %v448
    %v491 = vunpack.c.l.b16 %v449
    %v492 = vunpack.c.h.b16 %v449
    %v493 = vunpack.c.l.b16 %v450
    %v494 = vunpack.c.h.b16 %v450
    %v495 = vunpack.c.l.b16 %v451
    %v496 = vunpack.c.h.b16 %v451
    %v497 = vunpack.c.l.b16 %v452
    %v498 = vunpack.c.h.b16 %v452
    %v499 = vunpack.c.l.b16 %v453
    %v500 = vunpack.c.h.b16 %v453
    %v501 = vunpack.c.l.b16 %v454
    %v502 = vunpack.c.h.b16 %v454
    %v503 = vunpack.c.l.b16 %v455
    %v504 = vunpack.c.h.b16 %v455
    %v505 = vunpack.c.l.b16 %v456
    %v506 = vunpack.c.h.b16 %v456
    %v507 = vunpack.c.l.b16 %v457
    %v508 = vunpack.c.h.b16 %v457
    %v509 = vunpack.c.l.b16 %v458
    %v510 = vunpack.c.h.b16 %v458
    %v511 = vunpack.c.l.b16 %v459
    %v512 = vunpack.c.h.b16 %v459
    %v513 = vunpack.c.l.b16 %v460
    %v514 = vunpack.c.h.b16 %v460
    %v515 = vpack.c.b16 %v485, %v483
    %v516 = vpack.c.b16 %v486, %v484
    %v517 = vpack.c.b16 %v489, %v487
    %v518 = vpack.c.b16 %v490, %v488
    %v519 = vpack.c.b16 %v493, %v491
    %v520 = vpack.c.b16 %v494, %v492
    %v521 = vpack.c.b16 %v497, %v495
    %v522 = vpack.c.b16 %v498, %v496
    %v523 = vpack.c.b16 %v501, %v499
    %v524 = vpack.c.b16 %v502, %v500
    %v525 = vpack.c.b16 %v505, %v503
    %v526 = vpack.c.b16 %v506, %v504
    %v527 = vpack.c.b16 %v509, %v507
    %v528 = vpack.c.b16 %v510, %v508
    %v529 = vpack.c.b16 %v513, %v511
    %v530 = vpack.c.b16 %v514, %v512
    %547 = vmatpush.bf16.msra.mxu0 %v529
    %548 = vmatpush.bf16.msra.mxu0 %v527
    %549 = vmatpush.bf16.msra.mxu0 %v525
    %550 = vmatpush.bf16.msra.mxu0 %v523
    %551 = vmatpush.bf16.msra.mxu0 %v521
    %552 = vmatpush.bf16.msra.mxu0 %v519
    %553 = vmatpush.bf16.msra.mxu0 %v517
    %554 = vmatpush.bf16.msra.mxu0 %v515
    %555 = vmatmul.bf16.gmra.mxu0 %v444
    %v556 = vpop.f32.mrf.mxu0
    %v557 = vadd.f32 %v463, %v556
    %v558 = vpop.f32.mrf.mxu0
    %v559 = vadd.f32 %v463, %v558
    %560 = vdwg.mxu0
    %561 = vmatpush.bf16.msra.mxu0 %v530
    %562 = vmatpush.bf16.msra.mxu0 %v528
    %563 = vmatpush.bf16.msra.mxu0 %v526
    %564 = vmatpush.bf16.msra.mxu0 %v524
    %565 = vmatpush.bf16.msra.mxu0 %v522
    %566 = vmatpush.bf16.msra.mxu0 %v520
    %567 = vmatpush.bf16.msra.mxu0 %v518
    %568 = vmatpush.bf16.msra.mxu0 %v516
    %569 = vmatmul.bf16.gmra.mxu0 %v444
    %v570 = vpop.f32.mrf.mxu0
    %v571 = vadd.f32 %v464, %v570
    %v572 = vpop.f32.mrf.mxu0
    %v573 = vadd.f32 %v464, %v572
    %574 = vdwg.mxu0
    %v575 = vmax.f32 %v557, 0.0
    %v576 = vmax.f32 %v571, 0.0
    %v577 = vmax.f32 %v559, 0.0
    %v578 = vmax.f32 %v573, 0.0
    %v579 = vpack.c.bf16 %v576, %v575
    %v580 = vpack.c.bf16 %v578, %v577
    %581 = vst [vmem:[#allocation2] sm:$0xff] %v579
    %582 = vst [vmem:[#allocation2 + $0x8] sm:$0xff] %v580
    %v583 = vld [vmem:[#allocation2] sm:$0xff]
    %v584 = vld [vmem:[#allocation2 + $0x8] sm:$0xff]
    %v585 = vld [vmem:[#allocation12] sm:$0xf]
    %v586 = vld [vmem:[#allocation12 + $0x4] sm:$0xf]
    %v587 = vld [vmem:[#allocation12 + $0x8] sm:$0xf]
    %v588 = vld [vmem:[#allocation12 + $0xc] sm:$0xf]
    %v589 = vld [vmem:[#allocation12 + $0x10] sm:$0xf]
    %v590 = vld [vmem:[#allocation12 + $0x14] sm:$0xf]
    %v591 = vld [vmem:[#allocation12 + $0x18] sm:$0xf]
    %v592 = vld [vmem:[#allocation12 + $0x1c] sm:$0xf]
    %v593 = vld [vmem:[#allocation12 + $0x20] sm:$0xf]
    %v594 = vld [vmem:[#allocation12 + $0x24] sm:$0xf]
    %v595 = vld [vmem:[#allocation12 + $0x28] sm:$0xf]
    %v596 = vld [vmem:[#allocation12 + $0x2c] sm:$0xf]
    %v597 = vld [vmem:[#allocation12 + $0x30] sm:$0xf]
    %v598 = vld [vmem:[#allocation12 + $0x34] sm:$0xf]
    %v599 = vld [vmem:[#allocation12 + $0x38] sm:$0xf]
    %v600 = vld [vmem:[#allocation12 + $0x3c] sm:$0xf]
    %v601 = vld [vmem:[#allocation12 + $0x40] sm:$0xf]
    %v602 = vld [vmem:[#allocation12 + $0x44] sm:$0xf]
    %v603 = vld [vmem:[#allocation12 + $0x48] sm:$0xf]
    %v604 = vld [vmem:[#allocation12 + $0x4c] sm:$0xf]
    %v605 = vld [vmem:[#allocation12 + $0x50] sm:$0xf]
    %v606 = vld [vmem:[#allocation12 + $0x54] sm:$0xf]
    %v607 = vld [vmem:[#allocation12 + $0x58] sm:$0xf]
    %v608 = vld [vmem:[#allocation12 + $0x5c] sm:$0xf]
    %v609 = vld [vmem:[#allocation12 + $0x60] sm:$0xf]
    %v610 = vld [vmem:[#allocation12 + $0x64] sm:$0xf]
    %v611 = vld [vmem:[#allocation12 + $0x68] sm:$0xf]
    %v612 = vld [vmem:[#allocation12 + $0x6c] sm:$0xf]
    %v613 = vld [vmem:[#allocation12 + $0x70] sm:$0xf]
    %v614 = vld [vmem:[#allocation12 + $0x74] sm:$0xf]
    %v615 = vld [vmem:[#allocation12 + $0x78] sm:$0xf]
    %v616 = vld [vmem:[#allocation12 + $0x7c] sm:$0xf]
    %v617 = vld [vmem:[%s8] sm:$0x1]
    %v619 = vperm.slane %v617, 0
    %v623 = vunpack.c.l.b16 %v583
    %v624 = vunpack.c.h.b16 %v583
    %v625 = vunpack.c.l.b16 %v584
    %v626 = vunpack.c.h.b16 %v584
    %v627 = vpack.c.b16 %v625, %v623
    %v628 = vpack.c.b16 %v626, %v624
    %v663 = vunpack.c.l.b16 %v585
    %v664 = vunpack.c.l.b16 %v586
    %v665 = vunpack.c.l.b16 %v587
    %v666 = vunpack.c.l.b16 %v588
    %v667 = vunpack.c.l.b16 %v589
    %v668 = vunpack.c.l.b16 %v590
    %v669 = vunpack.c.l.b16 %v591
    %v670 = vunpack.c.l.b16 %v592
    %v671 = vunpack.c.l.b16 %v593
    %v672 = vunpack.c.l.b16 %v594
    %v673 = vunpack.c.l.b16 %v595
    %v674 = vunpack.c.l.b16 %v596
    %v675 = vunpack.c.l.b16 %v597
    %v676 = vunpack.c.l.b16 %v598
    %v677 = vunpack.c.l.b16 %v599
    %v678 = vunpack.c.l.b16 %v600
    %v679 = vunpack.c.l.b16 %v601
    %v680 = vunpack.c.l.b16 %v602
    %v681 = vunpack.c.l.b16 %v603
    %v682 = vunpack.c.l.b16 %v604
    %v683 = vunpack.c.l.b16 %v605
    %v684 = vunpack.c.l.b16 %v606
    %v685 = vunpack.c.l.b16 %v607
    %v686 = vunpack.c.l.b16 %v608
    %v687 = vunpack.c.l.b16 %v609
    %v688 = vunpack.c.l.b16 %v610
    %v689 = vunpack.c.l.b16 %v611
    %v690 = vunpack.c.l.b16 %v612
    %v691 = vunpack.c.l.b16 %v613
    %v692 = vunpack.c.l.b16 %v614
    %v693 = vunpack.c.l.b16 %v615
    %v694 = vunpack.c.l.b16 %v616
    %v695 = vpack.c.b16 %v664, %v663
    %v696 = vpack.c.b16 %v666, %v665
    %v697 = vpack.c.b16 %v668, %v667
    %v698 = vpack.c.b16 %v670, %v669
    %v699 = vpack.c.b16 %v672, %v671
    %v700 = vpack.c.b16 %v674, %v673
    %v701 = vpack.c.b16 %v676, %v675
    %v702 = vpack.c.b16 %v678, %v677
    %v703 = vpack.c.b16 %v680, %v679
    %v704 = vpack.c.b16 %v682, %v681
    %v705 = vpack.c.b16 %v684, %v683
    %v706 = vpack.c.b16 %v686, %v685
    %v707 = vpack.c.b16 %v688, %v687
    %v708 = vpack.c.b16 %v690, %v689
    %v709 = vpack.c.b16 %v692, %v691
    %v710 = vpack.c.b16 %v694, %v693
    %727 = vmatpush.bf16.msra.mxu0 %v702
    %728 = vmatpush.bf16.msra.mxu0 %v701
    %729 = vmatpush.bf16.msra.mxu0 %v700
    %730 = vmatpush.bf16.msra.mxu0 %v699
    %731 = vmatpush.bf16.msra.mxu0 %v698
    %732 = vmatpush.bf16.msra.mxu0 %v697
    %733 = vmatpush.bf16.msra.mxu0 %v696
    %734 = vmatpush.bf16.msra.mxu0 %v695
    %735 = vmatmul.bf16.gmra.mxu0 %v627
    %v736 = vpop.f32.mrf.mxu0
    %v737 = vadd.f32 %v619, %v736
    %v738 = vpop.f32.mrf.mxu0
    %v739 = vadd.f32 %v619, %v738
    %740 = vdwg.mxu0
    %741 = vmatpush.bf16.msra.mxu0 %v710
    %742 = vmatpush.bf16.msra.mxu0 %v709
    %743 = vmatpush.bf16.msra.mxu0 %v708
    %744 = vmatpush.bf16.msra.mxu0 %v707
    %745 = vmatpush.bf16.msra.mxu0 %v706
    %746 = vmatpush.bf16.msra.mxu0 %v705
    %747 = vmatpush.bf16.msra.mxu0 %v704
    %748 = vmatpush.bf16.msra.mxu0 %v703
    %749 = vmatmul.bf16.gmra.mxu0 %v628
    %v750 = vpop.f32.mrf.mxu0
    %v751 = vadd.f32 %v737, %v750
    %v752 = vpop.f32.mrf.mxu0
    %v753 = vadd.f32 %v739, %v752
    %754 = vdwg.mxu0
    %755 = vadd.xlane.f32.xlu0 %v751
    %v756 = vpop.xlane.xlu0 %755
    %757 = vadd.xlane.f32.xlu0 %v753
    %v758 = vpop.xlane.xlu0 %757
    %v759 = vrcp.pop 128.0
    %v760 = vmul.f32 128.0, %v759
    %v761 = vsub.f32 1.0, %v760
    %v762 = vmul.f32 %v759, %v761
    %v763 = vadd.f32 %v759, %v762
    %vm764 = vweird.f32 %v759
    %v765 = vsel %vm764, %v759, %v763
    %v766 = vmul.f32 %v756, %v765
    %v767 = vmul.f32 %v758, %v765
    %v768 = vsub.f32 %v751, %v766
    %v769 = vsub.f32 %v753, %v767
    %v770 = vmul.f32 %v768, %v768
    %v771 = vmul.f32 %v769, %v769
    %772 = vadd.xlane.f32.xlu0 %v770
    %v773 = vpop.xlane.xlu0 %772
    %774 = vadd.xlane.f32.xlu0 %v771
    %v775 = vpop.xlane.xlu0 %774
    %v776 = vrcp.pop 127.0
    %v777 = vmul.f32 127.0, %v776
    %v778 = vsub.f32 1.0, %v777
    %v779 = vmul.f32 %v776, %v778
    %v780 = vadd.f32 %v776, %v779
    %vm781 = vweird.f32 %v776
    %v782 = vsel %vm781, %v776, %v780
    %v783 = vmul.f32 %v773, %v782
    %v784 = vmul.f32 %v775, %v782
    %v785 = vrsqrt.pop %v783
    %v786 = vmul.f32 %v785, %v783
    %v787 = vmul.f32 %v786, %v785
    %v788 = vmul.f32 0.5, %v787
    %v789 = vsub.f32 1.5, %v788
    %v790 = vmul.f32 %v785, %v789
    %v791 = vmul.f32 %v783, %v790
    %vm792 = vcmp.eq.f32.partialorder %v783, inf
    %v793 = vsel %vm792, %v783, %v791
    %vm794 = vcmp.eq.f32.partialorder %v783, 0.0
    %v795 = vand.u32 %v783, 2147483648
    %v796 = vsel %vm794, %v795, %v793
    %v797 = vrsqrt.pop %v784
    %v798 = vmul.f32 %v797, %v784
    %v799 = vmul.f32 %v798, %v797
    %v800 = vmul.f32 0.5, %v799
    %v801 = vsub.f32 1.5, %v800
    %v802 = vmul.f32 %v797, %v801
    %v803 = vmul.f32 %v784, %v802
    %vm804 = vcmp.eq.f32.partialorder %v784, inf
    %v805 = vsel %vm804, %v784, %v803
    %vm806 = vcmp.eq.f32.partialorder %v784, 0.0
    %v807 = vand.u32 %v784, 2147483648
    %v808 = vsel %vm806, %v807, %v805
    %v809 = vadd.f32 %v796, 1e-06
    %v810 = vadd.f32 %v808, 1e-06
    %v811 = vrcp.pop %v809
    %v812 = vrcp.pop %v810
    %v813 = vld [vmem:[%s9] sm:$0x1]
    %v815 = vperm.slane %v813, 0
    %v817 = vmul.f32 %v815, %v811
    %v818 = vmul.f32 %v815, %v812
    %v819 = vmul.f32 %v768, %v817
    %v820 = vmul.f32 %v769, %v818
    %v821 = vld [vmem:[%s10] sm:$0x1]
    %v823 = vperm.slane %v821, 0
    %v825 = vadd.f32 %v819, %v823
    %v826 = vadd.f32 %v820, %v823
    %827 = vst [vmem:[#allocation14] sm:$0xff] %v825
    %828 = vst [vmem:[#allocation14 + $0x8] sm:$0xff] %v826
    // Predicated region
    $region70: #{tpu_custom_call.1} parent=1 // pred_check
      _
    $region71: #{tpu_custom_call.1} parent=1 // pred_check_branch
      %830 = sbr.rel (0) target = $region73
    $region72: #{tpu_custom_call.1} parent=1 // pred_region
      %832 = vsyncadd [#allocation5], 0
      %s833 = sshll.u32 [#allocation14], 4
      %s834 = int_to_ptr.vmem [resolvable:$true] %s833
      %s835 = sshll.u32 %s11, 4
      %s836 = int_to_ptr.hbm [resolvable:$true] %s835
      %841 = dma.vmem_to_hbm [thread:$0]  %s834, 256, %s836, [#allocation5], 128, 128, 8
    $region73: #{tpu_custom_call.1} parent=1 // pred_fallthru
      _
    // Predicated region
    $region74: #{tpu_custom_call.1} parent=1 // pred_check
      _
    $region75: #{tpu_custom_call.1} parent=1 // pred_check_branch
      %843 = sbr.rel (0) target = $region77
    $region76: #{tpu_custom_call.1} parent=1 // pred_region
      %845 = dma.done [#allocation5], 256
    $region77: #{tpu_custom_call.1} parent=1 // pred_fallthru
      _
    %846 = vsyncpa [#allocation4], 1
    %847 = vsyncpa [#allocation7], 1
    %848 = vsyncpa [#allocation10], 1
    %849 = vsyncpa [#allocation13], 1
    %850 = vsyncpa [#allocation5], 1

</llo_original>
